<compile_context>
chip_gen: v6e
topology: v6e:2x2x1
jax: 0.10.0
libtpu: 0.0.40
codegen_flags: <defaults>
</compile_context>

<pallas_src>
import numpy as np
import jax
import jax.numpy as jnp
from jax import lax
from jax.experimental import pallas as pl
from jax.experimental.pallas import tpu as pltpu


def _pool_out(d):
    """Output size of MaxPool2d(kernel=3, stride=2, padding=0) along one dim."""
    return (d - 3) // 2 + 1


def _pick_channel_tile(C):
    """Channel tile: full C when small, else a 128-multiple divisor of C."""
    if C <= 256:
        return C
    for ct in (512, 256, 128):
        if C % ct == 0:
            return ct
    return C  # last dim equal to full array dim is always legal


def _make_psp_kernel(level_hw, pool_iter):
    """level_hw[l] = (H, W) of the INPUT to pool level l (static Python ints)."""

    def kernel(x_ref, *refs):
        # refs = (out_ref_0, ..., out_ref_{L-1}, scratch_0, ..., scratch_{L-1})
        out_refs = refs[:pool_iter]
        scr_refs = refs[pool_iter:]
        src = x_ref                                   # view: (H, W, Ct)
        for lvl in range(pool_iter):
            H, W = level_hw[lvl]
            Ho, Wo = _pool_out(H), _pool_out(W)
            scr = scr_refs[lvl]                       # (Ho, W, Ct)

            # Pass 1: max over the 3 window rows (stride-2 on the leading axis).
            r01 = jnp.maximum(src[pl.ds(0, Ho, stride=2), :, :],
                              src[pl.ds(1, Ho, stride=2), :, :])
            scr[...] = jnp.maximum(r01, src[pl.ds(2, Ho, stride=2), :, :])

            # Pass 2: max over the 3 window cols (stride-2 on the sublane axis).
            c01 = jnp.maximum(scr[:, pl.ds(0, Wo, stride=2), :],
                              scr[:, pl.ds(1, Wo, stride=2), :])
            out_refs[lvl][...] = jnp.maximum(c01, scr[:, pl.ds(2, Wo, stride=2), :])

            # Next level reads the pooled map straight from the VMEM output block.
            src = out_refs[lvl]

    return kernel


def psp_pool_concat(feats, pool_iter):
    """feats: (N, C, H, W).  Returns (N, C, sum_l Ho_l*Wo_l), dtype preserved."""
    N, C, H, W = feats.shape
    dtype = feats.dtype

    # Static per-level geometry.
    level_hw = []
    h, w = H, W
    for _ in range(pool_iter):
        level_hw.append((h, w))
        h, w = _pool_out(h), _pool_out(w)
    out_hw = [(_pool_out(hh), _pool_out(ww)) for hh, ww in level_hw]

    Ct = _pick_channel_tile(C)
    n_ct = pl.cdiv(C, Ct)

    # NCHW -> NHWC so channels sit on the lane axis inside the kernel.
    x = jnp.transpose(feats, (0, 2, 3, 1))           # (N, H, W, C)

    out_shapes = tuple(jax.ShapeDtypeStruct((N, ho, wo, C), dtype) for ho, wo in out_hw)
    out_specs = tuple(pl.BlockSpec((None, ho, wo, Ct), lambda n, c: (n, 0, 0, c))
                      for ho, wo in out_hw)
    in_specs = [pl.BlockSpec((None, H, W, Ct), lambda n, c: (n, 0, 0, c))]
    scratch_shapes = [pltpu.VMEM((_pool_out(hh), ww, Ct), dtype) for hh, ww in level_hw]

    outs = pl.pallas_call(
        _make_psp_kernel(level_hw, pool_iter),
        out_shape=out_shapes,
        grid=(N, n_ct),
        in_specs=in_specs,
        out_specs=out_specs,
        scratch_shapes=scratch_shapes,
        compiler_params=pltpu.CompilerParams(
            dimension_semantics=("parallel", "parallel"),
            vmem_limit_bytes=32 * 1024 * 1024,
        ),
    )(x)

    if not isinstance(outs, (tuple, list)):
        outs = (outs,)

    # Flatten each level (free reshape: contiguous merge of the two major dims),
    # concat along the spatial axis, then transpose back to the module's layout.
    flat = [o.reshape(N, o.shape[1] * o.shape[2], C) for o in outs]
    cat = flat[0] if len(flat) == 1 else jnp.concatenate(flat, axis=1)
    return jnp.transpose(cat, (0, 2, 1))             # (N, C, sum P_l)


# ----------------------------- Module port -----------------------------------
class PSPModulePallas:
    def __init__(self, in_hw, pool_iter=1, sigma=0.2):
        self.pool_iter = pool_iter
        if not isinstance(in_hw, (list, tuple)):
            in_hw = (in_hw, in_hw)
        hh, ww = in_hw

        # Deterministic buffer construction mirroring __init__ (unused in forward).
        def _create_grid(h, w):
            X, Y = np.meshgrid(np.arange(w), np.arange(h))
            return (X.astype(np.float32) / w).ravel(), (Y.astype(np.float32) / h).ravel()

        X0, Y0 = _create_grid(hh, ww)
        Xp, Yp = [], []
        for _ in range(pool_iter):
            hh //= 2
            ww //= 2
            X, Y = _create_grid(hh, ww)
            Xp.append(X)
            Yp.append(Y)
        Xp = np.hstack(Xp)
        Yp = np.hstack(Yp)
        dx = np.reshape(X0, (-1, 1)) - np.reshape(Xp, (1, -1))
        dy = np.reshape(Y0, (-1, 1)) - np.reshape(Yp, (1, -1))
        d2 = np.expand_dims(dx * dx + dy * dy, 0)
        self.P0 = jnp.asarray(np.expand_dims(np.stack([X0, Y0], axis=1), 0))
        self.Pp = jnp.asarray(np.expand_dims(np.stack([Xp, Yp], axis=1), 0))
        self.logW = jnp.asarray(-0.5 * d2 / sigma / sigma)

    def forward(self, feats):
        # feats: (N, C, H, W), same layout/dtype semantics as the PyTorch module.
        return psp_pool_concat(feats, self.pool_iter)

    __call__ = forward


# ----------------------------- reference + test ------------------------------
def _ref_forward(feats, pool_iter):
    n, c = feats.shape[0], feats.shape[1]
    priors = []
    prior = feats
    for _ in range(pool_iter):
        prior = lax.reduce_window(
            prior, -jnp.inf, lax.max,
            window_dimensions=(1, 1, 3, 3),
            window_strides=(1, 1, 2, 2),
            padding="VALID",
        )
        priors.append(prior.reshape(n, c, -1))
    return jnp.concatenate(priors, axis=-1)


if __name__ == "__main__":
    key = jax.random.PRNGKey(0)
    N, C, H, W = 2, 4, 16, 16
    x = jax.random.normal(key, (N, C, H, W), dtype=jnp.float32)

    # pool_iter = 1 (module default)
    mod1 = PSPModulePallas(in_hw=(H, W), pool_iter=1, sigma=0.2)
    out1 = jax.block_until_ready(mod1(x))
    ref1 = _ref_forward(x, pool_iter=1)
    assert out1.shape == ref1.shape, (out1.shape, ref1.shape)
    np.testing.assert_allclose(np.asarray(out1), np.asarray(ref1), rtol=1e-6, atol=1e-6)

    # pool_iter = 2 exercises the fused multi-level path (VMEM-resident intermediate)
    mod2 = PSPModulePallas(in_hw=(H, W), pool_iter=2, sigma=0.2)
    out2 = jax.block_until_ready(mod2(x))
    ref2 = _ref_forward(x, pool_iter=2)
    assert out2.shape == ref2.shape, (out2.shape, ref2.shape)
    np.testing.assert_allclose(np.asarray(out2), np.asarray(ref2), rtol=1e-6, atol=1e-6)

    print("KERNEL_OK")
</pallas_src>

<mosaic_0001>
module attributes {stable_mosaic.version = 11 : i64} {
  func.func @kernel(%arg0: i32, %arg1: i32, %arg2: memref<1x16x16x4xf32, #tpu.memory_space<vmem>>, %arg3: memref<1x7x7x4xf32, #tpu.memory_space<vmem>>, %arg4: memref<7x16x4xf32, #tpu.memory_space<vmem>>) attributes {dimension_semantics = [#tpu.dimension_semantics<parallel>, #tpu.dimension_semantics<parallel>], iteration_bounds = array<i64: 2, 1>, scalar_prefetch = 0 : i64, scratch_operands = 1 : i64, tpu.core_type = #tpu.core_type<tc>, window_params = [{transform_indices = @transform_0, window_bounds = array<i64: 1, 16, 16, 4>}, {transform_indices = @transform_1, window_bounds = array<i64: 1, 7, 7, 4>}]} {
    %c0 = arith.constant 0 : index
    %c0_0 = arith.constant 0 : index
    %c0_1 = arith.constant 0 : index
    %c0_2 = arith.constant 0 : index
    %0 = tpu.strided_load %arg2[%c0, %c0_0, %c0_1, %c0_2] {strides = array<i32: 1, 2, 1, 1>} : memref<1x16x16x4xf32, #tpu.memory_space<vmem>>, vector<1x7x16x4xf32>
    %1 = vector.shape_cast %0 : vector<1x7x16x4xf32> to vector<7x16x4xf32>
    %c0_3 = arith.constant 0 : index
    %c1 = arith.constant 1 : index
    %c0_4 = arith.constant 0 : index
    %c0_5 = arith.constant 0 : index
    %2 = tpu.strided_load %arg2[%c0_3, %c1, %c0_4, %c0_5] {strides = array<i32: 1, 2, 1, 1>} : memref<1x16x16x4xf32, #tpu.memory_space<vmem>>, vector<1x7x16x4xf32>
    %3 = vector.shape_cast %2 : vector<1x7x16x4xf32> to vector<7x16x4xf32>
    %4 = arith.maximumf %1, %3 : vector<7x16x4xf32>
    %c0_6 = arith.constant 0 : index
    %c2 = arith.constant 2 : index
    %c0_7 = arith.constant 0 : index
    %c0_8 = arith.constant 0 : index
    %5 = tpu.strided_load %arg2[%c0_6, %c2, %c0_7, %c0_8] {strides = array<i32: 1, 2, 1, 1>} : memref<1x16x16x4xf32, #tpu.memory_space<vmem>>, vector<1x7x16x4xf32>
    %6 = vector.shape_cast %5 : vector<1x7x16x4xf32> to vector<7x16x4xf32>
    %7 = arith.maximumf %4, %6 : vector<7x16x4xf32>
    %c0_9 = arith.constant 0 : index
    %c0_10 = arith.constant 0 : index
    %c0_11 = arith.constant 0 : index
    %8 = vector.load %arg4[%c0_9, %c0_10, %c0_11] : memref<7x16x4xf32, #tpu.memory_space<vmem>>, vector<7x16x4xf32>
    tpu.vector_store %arg4[%c0_9, %c0_10, %c0_11], %7 {strides = array<i32>} : memref<7x16x4xf32, #tpu.memory_space<vmem>>, vector<7x16x4xf32>,
    %c0_12 = arith.constant 0 : index
    %c0_13 = arith.constant 0 : index
    %c0_14 = arith.constant 0 : index
    %9 = tpu.strided_load %arg4[%c0_12, %c0_13, %c0_14] {strides = array<i32: 1, 2, 1>} : memref<7x16x4xf32, #tpu.memory_space<vmem>>, vector<7x7x4xf32>
    %c0_15 = arith.constant 0 : index
    %c1_16 = arith.constant 1 : index
    %c0_17 = arith.constant 0 : index
    %10 = tpu.strided_load %arg4[%c0_15, %c1_16, %c0_17] {strides = array<i32: 1, 2, 1>} : memref<7x16x4xf32, #tpu.memory_space<vmem>>, vector<7x7x4xf32>
    %11 = arith.maximumf %9, %10 : vector<7x7x4xf32>
    %c0_18 = arith.constant 0 : index
    %c2_19 = arith.constant 2 : index
    %c0_20 = arith.constant 0 : index
    %12 = tpu.strided_load %arg4[%c0_18, %c2_19, %c0_20] {strides = array<i32: 1, 2, 1>} : memref<7x16x4xf32, #tpu.memory_space<vmem>>, vector<7x7x4xf32>
    %13 = arith.maximumf %11, %12 : vector<7x7x4xf32>
    %c0_21 = arith.constant 0 : index
    %c0_22 = arith.constant 0 : index
    %c0_23 = arith.constant 0 : index
    %c0_24 = arith.constant 0 : index
    %14 = vector.load %arg3[%c0_21, %c0_22, %c0_23, %c0_24] : memref<1x7x7x4xf32, #tpu.memory_space<vmem>>, vector<1x7x7x4xf32>
    %15 = vector.shape_cast %14 : vector<1x7x7x4xf32> to vector<7x7x4xf32>
    %16 = vector.shape_cast %13 : vector<7x7x4xf32> to vector<1x7x7x4xf32>
    tpu.vector_store %arg3[%c0_21, %c0_22, %c0_23, %c0_24], %16 {strides = array<i32>} : memref<1x7x7x4xf32, #tpu.memory_space<vmem>>, vector<1x7x7x4xf32>,
    return
  }
  func.func @transform_0(%arg0: i32, %arg1: i32) -> (i32, i32, i32, i32) {
    %c0_i32 = arith.constant 0 : i32
    %c0_i32_0 = arith.constant 0 : i32
    %c0_i32_1 = arith.constant 0 : i32
    return %arg0, %c0_i32, %c0_i32_0, %arg1 : i32, i32, i32, i32
  }
  func.func @transform_1(%arg0: i32, %arg1: i32) -> (i32, i32, i32, i32) {
    %c0_i32 = arith.constant 0 : i32
    %c0_i32_0 = arith.constant 0 : i32
    %c0_i32_1 = arith.constant 0 : i32
    return %arg0, %c0_i32, %c0_i32_0, %arg1 : i32, i32, i32, i32
  }
}

</mosaic_0001>

<llo_original>
// kernel: tpu_custom_call.1
$region0: #{tpu_custom_call.1}
  #allocation0 [shape = 'u32[]', space=smem, size = 0x4, offset = 0x4, fixed_abs, tag = 'smem constant byte address 0x4 - core index']
  #allocation1 [shape = 'u32[144,128]{1,0:T(1,128)}', space=vmem, size = 0x12000, scoped, tag = 'internal scratch']
  #allocation2 [shape = 'f32[7,16,4]{2,1,0:T(8,128)}', space=vmem, size = 0xe000, scoped, tag = 'scratch operand']
  %s0 = inlined_call_operand.vmem [shape: f32[2,16,16,4], index: 0, kind: input, shape index: {}]
  %s1 = inlined_call_operand.vmem [shape: f32[2,7,7,4], index: 1, kind: output, shape index: {}]
  %s2 = sld [smem:[#allocation0]]
  $region37: #{tpu_custom_call.1} parent=0
    _
  %s4 = ssub.s32 1, %s2
  %s5 = scalar_select 0, %s4, %s2
  loop: start=0, step=1, limit=4
  $region2: #{tpu_custom_call.1} parent=0 // loop_pre_header
    _
  $region3: #{tpu_custom_call.1} parent=0 // loop_header
    %s7 = sphi 0, %s11
    %p8 = scmp.ge.s32.totalorder %s7, 4
    %s14 = sphi 0, %s26
    %s15 = sphi 0, %s22
    %s16 = sphi 0, %s14
    %s17 = sphi 0, %s15
    %s18 = sphi 0, %s16
    %s19 = sphi 0, %s17
    %s31 = sphi 0, %s33
    %s34 = sphi 0, %s31
    %s35 = sphi 0, %s34
    %s51 = sphi 0, %s35
    %s59 = sphi 0, %s61
    %s62 = sphi 0, %s59
    %s63 = sphi 0, %s62
    %s79 = sphi 0, %s63
  $region4: #{tpu_custom_call.1} parent=0 // loop_header_branch
    %10 = sbr.rel (%p8) target = $region8
  $region5: #{tpu_custom_call.1} parent=0 // loop_body
    %s12 = ssub.s32 %s7, 1
    %s13 = ssub.s32 %s7, 2
    %s20 = sadd.s32 1, %s15
    %p21 = scmp.ge.s32.totalorder %s20, 1
    %s22 = scalar_select %p21, 0, %s20
    %s23 = sadd.s32 1, %s14
    %s24 = scalar_select %p21, %s23, %s14
    %p25 = scmp.ge.s32.totalorder %s24, 2
    %s26 = scalar_select %p25, 0, %s24
    %s27 = ssub.s32 %s14, %s26
    %s28 = ssub.s32 %s15, %s22
    %s29 = sor.u32 %s27, %s28
    %p30 = scmp.eq.s32.totalorder %s29, 0
    %s32 = sadd.s32 %s31, 1
    %s33 = scalar_select %p30, %s31, %s32
    %p36 = pneg %p30
    %p37 = scmp.eq.s32.totalorder %s7, 1
    %p38 = por %p36, %p37
    %p39 = scmp.ne.s32.totalorder %s31, %s34
    %p40 = scmp.eq.s32.totalorder %s7, 0
    %p41 = por %p39, %p40
    %p42 = scmp.ne.s32.totalorder %s31, %s34
    %p43 = scmp.eq.s32.totalorder %s12, 1
    %p44 = por %p42, %p43
    %p45 = scmp.ne.s32.totalorder %s34, %s35
    %p46 = scmp.eq.s32.totalorder %s12, 0
    %p47 = por %p45, %p46
    %p48 = scmp.ne.s32.totalorder %s34, %s35
    %p49 = scmp.eq.s32.totalorder %s13, 1
    %p50 = por %p48, %p49
    %p52 = scmp.ne.s32.totalorder %s35, %s51
    %p53 = scmp.eq.s32.totalorder %s13, 0
    %p54 = por %p52, %p53
    %s55 = ssub.s32 %s14, %s26
    %s56 = ssub.s32 %s15, %s22
    %s57 = sor.u32 %s55, %s56
    %p58 = scmp.eq.s32.totalorder %s57, 0
    %s60 = sadd.s32 %s59, 1
    %s61 = scalar_select %p58, %s59, %s60
    %p64 = pneg %p58
    %p65 = scmp.eq.s32.totalorder %s7, 1
    %p66 = por %p64, %p65
    %p67 = scmp.ne.s32.totalorder %s59, %s62
    %p68 = scmp.eq.s32.totalorder %s7, 0
    %p69 = por %p67, %p68
    %p70 = scmp.ne.s32.totalorder %s59, %s62
    %p71 = scmp.eq.s32.totalorder %s12, 1
    %p72 = por %p70, %p71
    %p73 = scmp.ne.s32.totalorder %s62, %s63
    %p74 = scmp.eq.s32.totalorder %s12, 0
    %p75 = por %p73, %p74
    %p76 = scmp.ne.s32.totalorder %s62, %s63
    %p77 = scmp.eq.s32.totalorder %s13, 1
    %p78 = por %p76, %p77
    %p80 = scmp.ne.s32.totalorder %s63, %s79
    %p81 = scmp.eq.s32.totalorder %s13, 0
    %p82 = por %p80, %p81
    %p83 = scmp.le.s32.totalorder 1, %s7
    %p84 = scmp.lt.s32.totalorder %s7, 3
    %p85 = pnand %p83, %p84
    %p86 = pneg %p85
    // Predicated region
    $region9: #{tpu_custom_call.1} parent=5 // pred_check
      _
    $region10: #{tpu_custom_call.1} parent=5 // pred_check_branch
      %88 = sbr.rel (%p85) target = $region12
    $region11: #{tpu_custom_call.1} parent=5 // pred_region
      %s89 = ssub.s32 %s7, 1
    $region12: #{tpu_custom_call.1} parent=5 // pred_fallthru
      _
    %p90 = scmp.lt.s32.totalorder %s7, 2
    // Predicated region
    $region13: #{tpu_custom_call.1} parent=5 // pred_check
      %p91 = pneg %p90
    $region14: #{tpu_custom_call.1} parent=5 // pred_check_branch
      %93 = sbr.rel (%p91) target = $region16
    $region15: #{tpu_custom_call.1} parent=5 // pred_region
      // Predicated region
      $region17: #{tpu_custom_call.1} parent=15 // pred_check
        %p94 = pneg %p41
      $region18: #{tpu_custom_call.1} parent=15 // pred_check_branch
        %96 = sbr.rel (%p94) target = $region20
      $region19: #{tpu_custom_call.1} parent=15 // pred_region
        %p97 = scmp.lt.s32.totalorder %s14, 1
        %s98 = scalar_select %p97, %s14, 1
        %p99 = scmp.lt.s32.totalorder %s15, 0
        %s100 = scalar_select %p99, %s15, 0
        %s101 = smul.addr %s98, 32
        %s102 = sadd.s32 %s100, %s101
        %s103 = smul.addr %s102, 8
        %s104 = scalar_lea.vmem %s0, %s103
      $region20: #{tpu_custom_call.1} parent=15 // pred_fallthru
        _
    $region16: #{tpu_custom_call.1} parent=5 // pred_fallthru
      _
    %p105 = scmp.le.s32.totalorder 1, %s7
    %p106 = scmp.lt.s32.totalorder %s7, 3
    %p107 = pnand %p105, %p106
    %p108 = pneg %p107
    // Predicated region
    $region21: #{tpu_custom_call.1} parent=5 // pred_check
      _
    $region22: #{tpu_custom_call.1} parent=5 // pred_check_branch
      %110 = sbr.rel (%p107) target = $region24
    $region23: #{tpu_custom_call.1} parent=5 // pred_region
      %s111 = ssub.s32 %s7, 1
      %p112 = scmp.lt.s32.totalorder %s16, 1
      %s113 = scalar_select %p112, %s16, 1
      %p114 = scmp.lt.s32.totalorder %s17, 0
      %s115 = scalar_select %p114, %s17, 0
      %s116 = smul.addr %s113, 32
      %s117 = sadd.s32 %s115, %s116
      %s118 = smul.addr %s117, 8
      %s119 = scalar_lea.vmem %s0, %s118
      %p120 = pneg %p47
      %p121 = pneg %p44
      %p122 = pneg %p75
      %p123 = pneg %p72
      %p124 = scmp.lt.s32.totalorder %s16, 1
      %s125 = scalar_select %p124, %s16, 1
      %p126 = scmp.lt.s32.totalorder %s17, 0
      %s127 = scalar_select %p126, %s17, 0
      %s128 = smul.addr %s125, 7
      %s129 = sadd.s32 %s127, %s128
      %s130 = smul.addr %s129, 8
      %s131 = scalar_lea.vmem %s1, %s130
      %p132 = scmp.lt.s32.totalorder %s16, 1
      %s133 = scalar_select %p132, %s16, 1
      %p134 = scmp.lt.s32.totalorder %s17, 0
      %s135 = scalar_select %p134, %s17, 0
      %s136 = smul.addr %s133, 32
      %s137 = sadd.s32 %s135, %s136
      %s138 = smul.addr %s137, 8
      %s139 = scalar_lea.vmem %s0, %s138
      %p140 = scmp.lt.s32.totalorder %s16, 1
      %s141 = scalar_select %p140, %s16, 1
      %p142 = scmp.lt.s32.totalorder %s17, 0
      %s143 = scalar_select %p142, %s17, 0
      %s144 = smul.addr %s141, 7
      %s145 = sadd.s32 %s143, %s144
      %s146 = smul.addr %s145, 8
      %s147 = scalar_lea.vmem %s1, %s146
      %v148 = vld [vmem:[%s139] sm:$0xff]
      %v149 = vld [vmem:[%s139 + $0x8] sm:$0xff]
      %v150 = vld [vmem:[%s139 + $0x20] sm:$0xff]
      %v151 = vld [vmem:[%s139 + $0x28] sm:$0xff]
      %v152 = vld [vmem:[%s139 + $0x40] sm:$0xff]
      %v153 = vld [vmem:[%s139 + $0x48] sm:$0xff]
      %v154 = vld [vmem:[%s139 + $0x60] sm:$0xff]
      %v155 = vld [vmem:[%s139 + $0x68] sm:$0xff]
      %v156 = vld [vmem:[%s139 + $0x80] sm:$0xff]
      %v157 = vld [vmem:[%s139 + $0x88] sm:$0xff]
      %v158 = vld [vmem:[%s139 + $0xa0] sm:$0xff]
      %v159 = vld [vmem:[%s139 + $0xa8] sm:$0xff]
      %v160 = vld [vmem:[%s139 + $0xc0] sm:$0xff]
      %v161 = vld [vmem:[%s139 + $0xc8] sm:$0xff]
      %s162 = scalar_lea.vmem %s139, 16
      %v163 = vld [vmem:[%s162] sm:$0xff]
      %v164 = vld [vmem:[%s162 + $0x8] sm:$0xff]
      %v165 = vld [vmem:[%s162 + $0x20] sm:$0xff]
      %v166 = vld [vmem:[%s162 + $0x28] sm:$0xff]
      %v167 = vld [vmem:[%s162 + $0x40] sm:$0xff]
      %v168 = vld [vmem:[%s162 + $0x48] sm:$0xff]
      %v169 = vld [vmem:[%s162 + $0x60] sm:$0xff]
      %v170 = vld [vmem:[%s162 + $0x68] sm:$0xff]
      %v171 = vld [vmem:[%s162 + $0x80] sm:$0xff]
      %v172 = vld [vmem:[%s162 + $0x88] sm:$0xff]
      %v173 = vld [vmem:[%s162 + $0xa0] sm:$0xff]
      %v174 = vld [vmem:[%s162 + $0xa8] sm:$0xff]
      %v175 = vld [vmem:[%s162 + $0xc0] sm:$0xff]
      %v176 = vld [vmem:[%s162 + $0xc8] sm:$0xff]
      %v177 = vmax.f32 %v148, %v163
      %v178 = vmax.f32 %v149, %v164
      %v179 = vmax.f32 %v150, %v165
      %v180 = vmax.f32 %v151, %v166
      %v181 = vmax.f32 %v152, %v167
      %v182 = vmax.f32 %v153, %v168
      %v183 = vmax.f32 %v154, %v169
      %v184 = vmax.f32 %v155, %v170
      %v185 = vmax.f32 %v156, %v171
      %v186 = vmax.f32 %v157, %v172
      %v187 = vmax.f32 %v158, %v173
      %v188 = vmax.f32 %v159, %v174
      %v189 = vmax.f32 %v160, %v175
      %v190 = vmax.f32 %v161, %v176
      %s191 = scalar_lea.vmem %s139, 32
      %v192 = vld [vmem:[%s191] sm:$0xff]
      %v193 = vld [vmem:[%s191 + $0x8] sm:$0xff]
      %v194 = vld [vmem:[%s191 + $0x20] sm:$0xff]
      %v195 = vld [vmem:[%s191 + $0x28] sm:$0xff]
      %v196 = vld [vmem:[%s191 + $0x40] sm:$0xff]
      %v197 = vld [vmem:[%s191 + $0x48] sm:$0xff]
      %v198 = vld [vmem:[%s191 + $0x60] sm:$0xff]
      %v199 = vld [vmem:[%s191 + $0x68] sm:$0xff]
      %v200 = vld [vmem:[%s191 + $0x80] sm:$0xff]
      %v201 = vld [vmem:[%s191 + $0x88] sm:$0xff]
      %v202 = vld [vmem:[%s191 + $0xa0] sm:$0xff]
      %v203 = vld [vmem:[%s191 + $0xa8] sm:$0xff]
      %v204 = vld [vmem:[%s191 + $0xc0] sm:$0xff]
      %v205 = vld [vmem:[%s191 + $0xc8] sm:$0xff]
      %v206 = vmax.f32 %v177, %v192
      %v207 = vmax.f32 %v178, %v193
      %v208 = vmax.f32 %v179, %v194
      %v209 = vmax.f32 %v180, %v195
      %v210 = vmax.f32 %v181, %v196
      %v211 = vmax.f32 %v182, %v197
      %v212 = vmax.f32 %v183, %v198
      %v213 = vmax.f32 %v184, %v199
      %v214 = vmax.f32 %v185, %v200
      %v215 = vmax.f32 %v186, %v201
      %v216 = vmax.f32 %v187, %v202
      %v217 = vmax.f32 %v188, %v203
      %v218 = vmax.f32 %v189, %v204
      %v219 = vmax.f32 %v190, %v205
      %vm220 = vcmask 31744
      %221 = vst.msk [vmem:[#allocation2] sm:$0xff] %vm220, %v206
      %222 = vst.msk [vmem:[#allocation2 + $0x8] sm:$0xff] %vm220, %v207
      %223 = vst.msk [vmem:[#allocation2 + $0x10] sm:$0xff] %vm220, %v208
      %224 = vst.msk [vmem:[#allocation2 + $0x18] sm:$0xff] %vm220, %v209
      %225 = vst.msk [vmem:[#allocation2 + $0x20] sm:$0xff] %vm220, %v210
      %226 = vst.msk [vmem:[#allocation2 + $0x28] sm:$0xff] %vm220, %v211
      %227 = vst.msk [vmem:[#allocation2 + $0x30] sm:$0xff] %vm220, %v212
      %228 = vst.msk [vmem:[#allocation2 + $0x38] sm:$0xff] %vm220, %v213
      %229 = vst.msk [vmem:[#allocation2 + $0x40] sm:$0xff] %vm220, %v214
      %230 = vst.msk [vmem:[#allocation2 + $0x48] sm:$0xff] %vm220, %v215
      %231 = vst.msk [vmem:[#allocation2 + $0x50] sm:$0xff] %vm220, %v216
      %232 = vst.msk [vmem:[#allocation2 + $0x58] sm:$0xff] %vm220, %v217
      %233 = vst.msk [vmem:[#allocation2 + $0x60] sm:$0xff] %vm220, %v218
      %234 = vst.msk [vmem:[#allocation2 + $0x68] sm:$0xff] %vm220, %v219
      %v235 = vld [vmem:[#allocation2] ss:$2 sm:$0x7f]
      %s236 = scalar_lea.vmem [#allocation2], 16
      %v237 = vld [vmem:[%s236] ss:$2 sm:$0x7f]
      %s238 = scalar_lea.vmem [#allocation2], 32
      %v239 = vld [vmem:[%s238] ss:$2 sm:$0x7f]
      %s240 = scalar_lea.vmem [#allocation2], 48
      %v241 = vld [vmem:[%s240] ss:$2 sm:$0x7f]
      %s242 = scalar_lea.vmem [#allocation2], 64
      %v243 = vld [vmem:[%s242] ss:$2 sm:$0x7f]
      %s244 = scalar_lea.vmem [#allocation2], 80
      %v245 = vld [vmem:[%s244] ss:$2 sm:$0x7f]
      %s246 = scalar_lea.vmem [#allocation2], 96
      %v247 = vld [vmem:[%s246] ss:$2 sm:$0x7f]
      %s248 = scalar_lea.vmem [#allocation2], 1
      %v249 = vld [vmem:[%s248] ss:$2 sm:$0x7f]
      %s250 = scalar_lea.vmem [#allocation2], 17
      %v251 = vld [vmem:[%s250] ss:$2 sm:$0x7f]
      %s252 = scalar_lea.vmem [#allocation2], 33
      %v253 = vld [vmem:[%s252] ss:$2 sm:$0x7f]
      %s254 = scalar_lea.vmem [#allocation2], 49
      %v255 = vld [vmem:[%s254] ss:$2 sm:$0x7f]
      %s256 = scalar_lea.vmem [#allocation2], 65
      %v257 = vld [vmem:[%s256] ss:$2 sm:$0x7f]
      %s258 = scalar_lea.vmem [#allocation2], 81
      %v259 = vld [vmem:[%s258] ss:$2 sm:$0x7f]
      %s260 = scalar_lea.vmem [#allocation2], 97
      %v261 = vld [vmem:[%s260] ss:$2 sm:$0x7f]
      %v262 = vmax.f32 %v235, %v249
      %v263 = vmax.f32 %v237, %v251
      %v264 = vmax.f32 %v239, %v253
      %v265 = vmax.f32 %v241, %v255
      %v266 = vmax.f32 %v243, %v257
      %v267 = vmax.f32 %v245, %v259
      %v268 = vmax.f32 %v247, %v261
      %s269 = scalar_lea.vmem [#allocation2], 2
      %v270 = vld [vmem:[%s269] ss:$2 sm:$0x7f]
      %s271 = scalar_lea.vmem [#allocation2], 18
      %v272 = vld [vmem:[%s271] ss:$2 sm:$0x7f]
      %s273 = scalar_lea.vmem [#allocation2], 34
      %v274 = vld [vmem:[%s273] ss:$2 sm:$0x7f]
      %s275 = scalar_lea.vmem [#allocation2], 50
      %v276 = vld [vmem:[%s275] ss:$2 sm:$0x7f]
      %s277 = scalar_lea.vmem [#allocation2], 66
      %v278 = vld [vmem:[%s277] ss:$2 sm:$0x7f]
      %s279 = scalar_lea.vmem [#allocation2], 82
      %v280 = vld [vmem:[%s279] ss:$2 sm:$0x7f]
      %s281 = scalar_lea.vmem [#allocation2], 98
      %v282 = vld [vmem:[%s281] ss:$2 sm:$0x7f]
      %v283 = vmax.f32 %v262, %v270
      %v284 = vmax.f32 %v263, %v272
      %v285 = vmax.f32 %v264, %v274
      %v286 = vmax.f32 %v265, %v276
      %v287 = vmax.f32 %v266, %v278
      %v288 = vmax.f32 %v267, %v280
      %v289 = vmax.f32 %v268, %v282
      %vm290 = vcmask 30720
      %291 = vst.msk [vmem:[%s147] sm:$0x7f] %vm290, %v283
      %292 = vst.msk [vmem:[%s147 + $0x8] sm:$0x7f] %vm290, %v284
      %293 = vst.msk [vmem:[%s147 + $0x10] sm:$0x7f] %vm290, %v285
      %294 = vst.msk [vmem:[%s147 + $0x18] sm:$0x7f] %vm290, %v286
      %295 = vst.msk [vmem:[%s147 + $0x20] sm:$0x7f] %vm290, %v287
      %296 = vst.msk [vmem:[%s147 + $0x28] sm:$0x7f] %vm290, %v288
      %297 = vst.msk [vmem:[%s147 + $0x30] sm:$0x7f] %vm290, %v289
      %p298 = scmp.lt.s32.totalorder %s16, 1
      %s299 = scalar_select %p298, %s16, 1
      %p300 = scmp.lt.s32.totalorder %s17, 0
      %s301 = scalar_select %p300, %s17, 0
      %s302 = smul.addr %s299, 7
      %s303 = sadd.s32 %s301, %s302
      %s304 = smul.addr %s303, 8
      %s305 = scalar_lea.vmem %s1, %s304
      // Predicated region
      $region25: #{tpu_custom_call.1} parent=23 // pred_check
        %p306 = pneg %p72
      $region26: #{tpu_custom_call.1} parent=23 // pred_check_branch
        %308 = sbr.rel (%p306) target = $region28
      $region27: #{tpu_custom_call.1} parent=23 // pred_region
        _
      $region28: #{tpu_custom_call.1} parent=23 // pred_fallthru
        _
    $region24: #{tpu_custom_call.1} parent=5 // pred_fallthru
      _
    %p309 = scmp.le.s32.totalorder 2, %s7
    // Predicated region
    $region29: #{tpu_custom_call.1} parent=5 // pred_check
      %p310 = pneg %p309
    $region30: #{tpu_custom_call.1} parent=5 // pred_check_branch
      %312 = sbr.rel (%p310) target = $region32
    $region31: #{tpu_custom_call.1} parent=5 // pred_region
      %s313 = ssub.s32 %s7, 2
      // Predicated region
      $region33: #{tpu_custom_call.1} parent=31 // pred_check
        %p314 = pneg %p78
      $region34: #{tpu_custom_call.1} parent=31 // pred_check_branch
        %316 = sbr.rel (%p314) target = $region36
      $region35: #{tpu_custom_call.1} parent=31 // pred_region
        %p317 = scmp.lt.s32.totalorder %s18, 1
        %s318 = scalar_select %p317, %s18, 1
        %p319 = scmp.lt.s32.totalorder %s19, 0
        %s320 = scalar_select %p319, %s19, 0
        %s321 = smul.addr %s318, 7
        %s322 = sadd.s32 %s320, %s321
        %s323 = smul.addr %s322, 8
        %s324 = scalar_lea.vmem %s1, %s323
      $region36: #{tpu_custom_call.1} parent=31 // pred_fallthru
        _
    $region32: #{tpu_custom_call.1} parent=5 // pred_fallthru
      _
  $region6: #{tpu_custom_call.1} parent=0 // loop_footer
    %s11 = sadd.s32 1, %s7
  $region7: #{tpu_custom_call.1} parent=0 // loop_footer_branch
    %6 = sbr.rel target = $region3
  $region8: #{tpu_custom_call.1} parent=0 // loop_exit
    _

</llo_original>
